<compile_context>
chip_gen: v5e
topology: v5e:2x2
jax: 0.10.0
libtpu: 0.0.40
codegen_flags: <defaults>
</compile_context>

<pallas_src>
import math
from functools import partial

import jax
import jax.numpy as jnp
from jax.experimental import pallas as pl
from jax.experimental.pallas import tpu as pltpu

FEAT_DIM = 2048   # resnet152 conv-feature channels (affine head input dim)


def _extract_patches(images, patch):
    """Backbone stand-in glue: non-overlapping patch extraction.

    (bs, S, c, h, w) -> (bs, S, gh*gw, c*patch*patch)
    """
    bs, S, c, h, w = images.shape
    gh, gw = h // patch, w // patch
    x = images.reshape(bs, S, c, gh, patch, gw, patch)
    x = x.transpose(0, 1, 3, 5, 2, 4, 6)
    return x.reshape(bs, S, gh * gw, c * patch * patch)


def encoder_kernel(x_ref, w_ref, b_ref, out_ref):
    """Single invocation: fused patch-embed + per-slice affine head + ReLU.

    x_ref  : (bs, S, 49, CPP)  bf16   unpadded patches (whole array in VMEM)
    w_ref  : (S, CPP, H)       bf16   fused weights W_fused[i] = w_patch @ w_aff[i]
    b_ref  : (S, 1, H)         f32    per-slice bias
    out_ref: (bs, S, 49, H)    f32    exact PyTorch output layout (no padding)
    """
    bs, S, _, _ = x_ref.shape
    # Short, statically unrolled loops (S and bs are tiny); each step is one clean
    # 2-D bf16 MXU matmul with f32 accumulation, avoiding any in-kernel relayout.
    for s in range(S):
        w_s = w_ref[s]                                   # (CPP, H) bf16
        b_s = b_ref[s]                                   # (1, H)   f32
        for bi in range(bs):
            x = x_ref[bi, s]                             # (49, CPP) bf16
            z = jnp.dot(x, w_s, preferred_element_type=jnp.float32)   # MXU, f32 acc
            out_ref[bi, s] = jnp.maximum(z + b_s, 0.0).astype(out_ref.dtype)


@partial(jax.jit, static_argnums=(4, 5))
def encoder_cnn_forward(images, w_patch, w_aff, b_aff, hidden_size, patch=2):
    """images: (bs, N+1, c, h, w) f32 -> V: (bs, N+1, 49, hidden) f32."""
    bs, S, c, h, w = images.shape
    gh, gw = h // patch, w // patch
    assert gh * gw == 49, "backbone stand-in must yield a 7x7 feature grid"
    CPP = c * patch * patch
    H = hidden_size

    # Wrapper-side glue for the backbone stand-in (unpadded; bf16 MXU operand).
    patches = _extract_patches(images, patch).astype(jnp.bfloat16)   # (bs,S,49,CPP)

    # Algebraic fusion of the (linear) backbone stand-in with each affine head.
    # NOTE: only valid while the backbone is linear and dropout is identity.
    w_fused = jnp.einsum("kf,sfh->skh", w_patch, w_aff).astype(jnp.bfloat16)  # (S,CPP,H)
    b_p = b_aff.astype(jnp.float32)                                           # (S,1,H)

    # Whole problem fits comfortably in VMEM at these shapes -> no grid, one DMA in,
    # one DMA out, zero per-step pipeline overhead.
    return pl.pallas_call(
        encoder_kernel,
        out_shape=jax.ShapeDtypeStruct((bs, S, gh * gw, H), jnp.float32),
        in_specs=[
            pl.BlockSpec(memory_space=pltpu.MemorySpace.VMEM),   # patches
            pl.BlockSpec(memory_space=pltpu.MemorySpace.VMEM),   # fused weights
            pl.BlockSpec(memory_space=pltpu.MemorySpace.VMEM),   # bias
        ],
        out_specs=pl.BlockSpec(memory_space=pltpu.MemorySpace.VMEM),
    )(patches, w_fused, b_p)


def init_params(key, S, c, hidden_size, patch=2):
    """Mirror init_weight: kaiming_uniform_(fan_in) on each affine head, bias = 0."""
    k_patch, k_aff = jax.random.split(key, 2)
    CPP = c * patch * patch
    # Backbone stand-in weights (synthetic, deterministic).
    w_patch = jax.random.normal(k_patch, (CPP, FEAT_DIM), dtype=jnp.float32) * 0.05
    # Kaiming uniform, mode='fan_in', default gain: bound = sqrt(6 / fan_in)
    bound = math.sqrt(6.0 / FEAT_DIM)
    w_aff = jax.random.uniform(
        k_aff, (S, FEAT_DIM, hidden_size), minval=-bound, maxval=bound, dtype=jnp.float32
    )
    b_aff = jnp.zeros((S, 1, hidden_size), dtype=jnp.float32)
    return w_patch, w_aff, b_aff


if __name__ == "__main__":
    key = jax.random.PRNGKey(0)
    bs, N, hidden = 2, 2, 32          # small shapes; head keeps the exact feat -> hidden affine
    S = N + 1                         # forward requires images.size(1) == N + 1
    c, h, w = 4, 14, 14               # 14x14 with 2x2 patches -> 7x7 = 49 positions
    patch = 2

    k_img, k_par = jax.random.split(key)
    images = jax.random.normal(k_img, (bs, S, c, h, w), dtype=jnp.float32)
    w_patch, w_aff, b_aff = init_params(k_par, S, c, hidden, patch)

    V = encoder_cnn_forward(images, w_patch, w_aff, b_aff, hidden, patch)
    V = jax.block_until_ready(V)

    # Pure-JAX f32 reference (bf16 MXU operands introduce ~1e-2 relative error).
    patches_f32 = _extract_patches(images, patch)
    w_fused_f32 = jnp.einsum("kf,sfh->skh", w_patch, w_aff)
    ref = jax.nn.relu(
        jnp.einsum("bspk,skh->bsph", patches_f32, w_fused_f32) + b_aff[None]
    )

    assert V.shape == (bs, S, 49, hidden)
    assert V.dtype == jnp.float32
    assert bool(jnp.all(V >= 0.0))                         # ReLU output
    assert bool(jnp.allclose(V, ref, rtol=3e-2, atol=3e-2))

    print("KERNEL_OK")
</pallas_src>

<mosaic_0001>
module attributes {stable_mosaic.version = 11 : i64} {
  func.func @encoder_kernel(%arg0: memref<2x3x49x16xbf16, #tpu.memory_space<vmem>>, %arg1: memref<3x16x32xbf16, #tpu.memory_space<vmem>>, %arg2: memref<3x1x32xf32, #tpu.memory_space<vmem>>, %arg3: memref<2x3x49x32xf32, #tpu.memory_space<vmem>>) attributes {dimension_semantics = [], scalar_prefetch = 0 : i64, scratch_operands = 0 : i64, tpu.core_type = #tpu.core_type<tc>} {
    %c0 = arith.constant 0 : index
    %c0_0 = arith.constant 0 : index
    %c0_1 = arith.constant 0 : index
    %0 = vector.load %arg1[%c0, %c0_0, %c0_1] : memref<3x16x32xbf16, #tpu.memory_space<vmem>>, vector<1x16x32xbf16>
    %1 = vector.shape_cast %0 : vector<1x16x32xbf16> to vector<16x32xbf16>
    %c0_2 = arith.constant 0 : index
    %c0_3 = arith.constant 0 : index
    %c0_4 = arith.constant 0 : index
    %2 = vector.load %arg2[%c0_2, %c0_3, %c0_4] : memref<3x1x32xf32, #tpu.memory_space<vmem>>, vector<1x1x32xf32>
    %3 = vector.shape_cast %2 : vector<1x1x32xf32> to vector<1x32xf32>
    %c0_5 = arith.constant 0 : index
    %c0_6 = arith.constant 0 : index
    %c0_7 = arith.constant 0 : index
    %c0_8 = arith.constant 0 : index
    %4 = vector.load %arg0[%c0_5, %c0_6, %c0_7, %c0_8] : memref<2x3x49x16xbf16, #tpu.memory_space<vmem>>, vector<1x1x49x16xbf16>
    %5 = vector.shape_cast %4 : vector<1x1x49x16xbf16> to vector<49x16xbf16>
    %cst = arith.constant dense<0.000000e+00> : vector<49x32xf32>
    %6 = tpu.matmul %5, %1, %cst {dimension_numbers = #tpu.dot_dimension_numbers<[1], [0], [0], [1], [0, 0, 1, 1], [], []>} : vector<49x16xbf16>, vector<16x32xbf16>, vector<49x32xf32> -> vector<49x32xf32>
    %7 = vector.broadcast %3 : vector<1x32xf32> to vector<49x32xf32>
    %8 = arith.addf %6, %7 : vector<49x32xf32>
    %cst_9 = arith.constant 0.000000e+00 : f32
    %9 = vector.broadcast %cst_9 : f32 to vector<49x32xf32>
    %10 = arith.maximumf %8, %9 : vector<49x32xf32>
    %c0_10 = arith.constant 0 : index
    %c0_11 = arith.constant 0 : index
    %c0_12 = arith.constant 0 : index
    %c0_13 = arith.constant 0 : index
    %11 = vector.load %arg3[%c0_10, %c0_11, %c0_12, %c0_13] : memref<2x3x49x32xf32, #tpu.memory_space<vmem>>, vector<1x1x49x32xf32>
    %12 = vector.shape_cast %11 : vector<1x1x49x32xf32> to vector<49x32xf32>
    %13 = vector.shape_cast %10 : vector<49x32xf32> to vector<1x1x49x32xf32>
    tpu.vector_store %arg3[%c0_10, %c0_11, %c0_12, %c0_13], %13 {strides = array<i32>} : memref<2x3x49x32xf32, #tpu.memory_space<vmem>>, vector<1x1x49x32xf32>,
    %c1 = arith.constant 1 : index
    %c0_14 = arith.constant 0 : index
    %c0_15 = arith.constant 0 : index
    %c0_16 = arith.constant 0 : index
    %14 = vector.load %arg0[%c1, %c0_14, %c0_15, %c0_16] : memref<2x3x49x16xbf16, #tpu.memory_space<vmem>>, vector<1x1x49x16xbf16>
    %15 = vector.shape_cast %14 : vector<1x1x49x16xbf16> to vector<49x16xbf16>
    %cst_17 = arith.constant dense<0.000000e+00> : vector<49x32xf32>
    %16 = tpu.matmul %15, %1, %cst_17 {dimension_numbers = #tpu.dot_dimension_numbers<[1], [0], [0], [1], [0, 0, 1, 1], [], []>} : vector<49x16xbf16>, vector<16x32xbf16>, vector<49x32xf32> -> vector<49x32xf32>
    %17 = vector.broadcast %3 : vector<1x32xf32> to vector<49x32xf32>
    %18 = arith.addf %16, %17 : vector<49x32xf32>
    %cst_18 = arith.constant 0.000000e+00 : f32
    %19 = vector.broadcast %cst_18 : f32 to vector<49x32xf32>
    %20 = arith.maximumf %18, %19 : vector<49x32xf32>
    %c1_19 = arith.constant 1 : index
    %c0_20 = arith.constant 0 : index
    %c0_21 = arith.constant 0 : index
    %c0_22 = arith.constant 0 : index
    %21 = vector.load %arg3[%c1_19, %c0_20, %c0_21, %c0_22] : memref<2x3x49x32xf32, #tpu.memory_space<vmem>>, vector<1x1x49x32xf32>
    %22 = vector.shape_cast %21 : vector<1x1x49x32xf32> to vector<49x32xf32>
    %23 = vector.shape_cast %20 : vector<49x32xf32> to vector<1x1x49x32xf32>
    tpu.vector_store %arg3[%c1_19, %c0_20, %c0_21, %c0_22], %23 {strides = array<i32>} : memref<2x3x49x32xf32, #tpu.memory_space<vmem>>, vector<1x1x49x32xf32>,
    %c1_23 = arith.constant 1 : index
    %c0_24 = arith.constant 0 : index
    %c0_25 = arith.constant 0 : index
    %24 = vector.load %arg1[%c1_23, %c0_24, %c0_25] : memref<3x16x32xbf16, #tpu.memory_space<vmem>>, vector<1x16x32xbf16>
    %25 = vector.shape_cast %24 : vector<1x16x32xbf16> to vector<16x32xbf16>
    %c1_26 = arith.constant 1 : index
    %c0_27 = arith.constant 0 : index
    %c0_28 = arith.constant 0 : index
    %26 = vector.load %arg2[%c1_26, %c0_27, %c0_28] : memref<3x1x32xf32, #tpu.memory_space<vmem>>, vector<1x1x32xf32>
    %27 = vector.shape_cast %26 : vector<1x1x32xf32> to vector<1x32xf32>
    %c0_29 = arith.constant 0 : index
    %c1_30 = arith.constant 1 : index
    %c0_31 = arith.constant 0 : index
    %c0_32 = arith.constant 0 : index
    %28 = vector.load %arg0[%c0_29, %c1_30, %c0_31, %c0_32] : memref<2x3x49x16xbf16, #tpu.memory_space<vmem>>, vector<1x1x49x16xbf16>
    %29 = vector.shape_cast %28 : vector<1x1x49x16xbf16> to vector<49x16xbf16>
    %cst_33 = arith.constant dense<0.000000e+00> : vector<49x32xf32>
    %30 = tpu.matmul %29, %25, %cst_33 {dimension_numbers = #tpu.dot_dimension_numbers<[1], [0], [0], [1], [0, 0, 1, 1], [], []>} : vector<49x16xbf16>, vector<16x32xbf16>, vector<49x32xf32> -> vector<49x32xf32>
    %31 = vector.broadcast %27 : vector<1x32xf32> to vector<49x32xf32>
    %32 = arith.addf %30, %31 : vector<49x32xf32>
    %cst_34 = arith.constant 0.000000e+00 : f32
    %33 = vector.broadcast %cst_34 : f32 to vector<49x32xf32>
    %34 = arith.maximumf %32, %33 : vector<49x32xf32>
    %c0_35 = arith.constant 0 : index
    %c1_36 = arith.constant 1 : index
    %c0_37 = arith.constant 0 : index
    %c0_38 = arith.constant 0 : index
    %35 = vector.load %arg3[%c0_35, %c1_36, %c0_37, %c0_38] : memref<2x3x49x32xf32, #tpu.memory_space<vmem>>, vector<1x1x49x32xf32>
    %36 = vector.shape_cast %35 : vector<1x1x49x32xf32> to vector<49x32xf32>
    %37 = vector.shape_cast %34 : vector<49x32xf32> to vector<1x1x49x32xf32>
    tpu.vector_store %arg3[%c0_35, %c1_36, %c0_37, %c0_38], %37 {strides = array<i32>} : memref<2x3x49x32xf32, #tpu.memory_space<vmem>>, vector<1x1x49x32xf32>,
    %c1_39 = arith.constant 1 : index
    %c1_40 = arith.constant 1 : index
    %c0_41 = arith.constant 0 : index
    %c0_42 = arith.constant 0 : index
    %38 = vector.load %arg0[%c1_39, %c1_40, %c0_41, %c0_42] : memref<2x3x49x16xbf16, #tpu.memory_space<vmem>>, vector<1x1x49x16xbf16>
    %39 = vector.shape_cast %38 : vector<1x1x49x16xbf16> to vector<49x16xbf16>
    %cst_43 = arith.constant dense<0.000000e+00> : vector<49x32xf32>
    %40 = tpu.matmul %39, %25, %cst_43 {dimension_numbers = #tpu.dot_dimension_numbers<[1], [0], [0], [1], [0, 0, 1, 1], [], []>} : vector<49x16xbf16>, vector<16x32xbf16>, vector<49x32xf32> -> vector<49x32xf32>
    %41 = vector.broadcast %27 : vector<1x32xf32> to vector<49x32xf32>
    %42 = arith.addf %40, %41 : vector<49x32xf32>
    %cst_44 = arith.constant 0.000000e+00 : f32
    %43 = vector.broadcast %cst_44 : f32 to vector<49x32xf32>
    %44 = arith.maximumf %42, %43 : vector<49x32xf32>
    %c1_45 = arith.constant 1 : index
    %c1_46 = arith.constant 1 : index
    %c0_47 = arith.constant 0 : index
    %c0_48 = arith.constant 0 : index
    %45 = vector.load %arg3[%c1_45, %c1_46, %c0_47, %c0_48] : memref<2x3x49x32xf32, #tpu.memory_space<vmem>>, vector<1x1x49x32xf32>
    %46 = vector.shape_cast %45 : vector<1x1x49x32xf32> to vector<49x32xf32>
    %47 = vector.shape_cast %44 : vector<49x32xf32> to vector<1x1x49x32xf32>
    tpu.vector_store %arg3[%c1_45, %c1_46, %c0_47, %c0_48], %47 {strides = array<i32>} : memref<2x3x49x32xf32, #tpu.memory_space<vmem>>, vector<1x1x49x32xf32>,
    %c2 = arith.constant 2 : index
    %c0_49 = arith.constant 0 : index
    %c0_50 = arith.constant 0 : index
    %48 = vector.load %arg1[%c2, %c0_49, %c0_50] : memref<3x16x32xbf16, #tpu.memory_space<vmem>>, vector<1x16x32xbf16>
    %49 = vector.shape_cast %48 : vector<1x16x32xbf16> to vector<16x32xbf16>
    %c2_51 = arith.constant 2 : index
    %c0_52 = arith.constant 0 : index
    %c0_53 = arith.constant 0 : index
    %50 = vector.load %arg2[%c2_51, %c0_52, %c0_53] : memref<3x1x32xf32, #tpu.memory_space<vmem>>, vector<1x1x32xf32>
    %51 = vector.shape_cast %50 : vector<1x1x32xf32> to vector<1x32xf32>
    %c0_54 = arith.constant 0 : index
    %c2_55 = arith.constant 2 : index
    %c0_56 = arith.constant 0 : index
    %c0_57 = arith.constant 0 : index
    %52 = vector.load %arg0[%c0_54, %c2_55, %c0_56, %c0_57] : memref<2x3x49x16xbf16, #tpu.memory_space<vmem>>, vector<1x1x49x16xbf16>
    %53 = vector.shape_cast %52 : vector<1x1x49x16xbf16> to vector<49x16xbf16>
    %cst_58 = arith.constant dense<0.000000e+00> : vector<49x32xf32>
    %54 = tpu.matmul %53, %49, %cst_58 {dimension_numbers = #tpu.dot_dimension_numbers<[1], [0], [0], [1], [0, 0, 1, 1], [], []>} : vector<49x16xbf16>, vector<16x32xbf16>, vector<49x32xf32> -> vector<49x32xf32>
    %55 = vector.broadcast %51 : vector<1x32xf32> to vector<49x32xf32>
    %56 = arith.addf %54, %55 : vector<49x32xf32>
    %cst_59 = arith.constant 0.000000e+00 : f32
    %57 = vector.broadcast %cst_59 : f32 to vector<49x32xf32>
    %58 = arith.maximumf %56, %57 : vector<49x32xf32>
    %c0_60 = arith.constant 0 : index
    %c2_61 = arith.constant 2 : index
    %c0_62 = arith.constant 0 : index
    %c0_63 = arith.constant 0 : index
    %59 = vector.load %arg3[%c0_60, %c2_61, %c0_62, %c0_63] : memref<2x3x49x32xf32, #tpu.memory_space<vmem>>, vector<1x1x49x32xf32>
    %60 = vector.shape_cast %59 : vector<1x1x49x32xf32> to vector<49x32xf32>
    %61 = vector.shape_cast %58 : vector<49x32xf32> to vector<1x1x49x32xf32>
    tpu.vector_store %arg3[%c0_60, %c2_61, %c0_62, %c0_63], %61 {strides = array<i32>} : memref<2x3x49x32xf32, #tpu.memory_space<vmem>>, vector<1x1x49x32xf32>,
    %c1_64 = arith.constant 1 : index
    %c2_65 = arith.constant 2 : index
    %c0_66 = arith.constant 0 : index
    %c0_67 = arith.constant 0 : index
    %62 = vector.load %arg0[%c1_64, %c2_65, %c0_66, %c0_67] : memref<2x3x49x16xbf16, #tpu.memory_space<vmem>>, vector<1x1x49x16xbf16>
    %63 = vector.shape_cast %62 : vector<1x1x49x16xbf16> to vector<49x16xbf16>
    %cst_68 = arith.constant dense<0.000000e+00> : vector<49x32xf32>
    %64 = tpu.matmul %63, %49, %cst_68 {dimension_numbers = #tpu.dot_dimension_numbers<[1], [0], [0], [1], [0, 0, 1, 1], [], []>} : vector<49x16xbf16>, vector<16x32xbf16>, vector<49x32xf32> -> vector<49x32xf32>
    %65 = vector.broadcast %51 : vector<1x32xf32> to vector<49x32xf32>
    %66 = arith.addf %64, %65 : vector<49x32xf32>
    %cst_69 = arith.constant 0.000000e+00 : f32
    %67 = vector.broadcast %cst_69 : f32 to vector<49x32xf32>
    %68 = arith.maximumf %66, %67 : vector<49x32xf32>
    %c1_70 = arith.constant 1 : index
    %c2_71 = arith.constant 2 : index
    %c0_72 = arith.constant 0 : index
    %c0_73 = arith.constant 0 : index
    %69 = vector.load %arg3[%c1_70, %c2_71, %c0_72, %c0_73] : memref<2x3x49x32xf32, #tpu.memory_space<vmem>>, vector<1x1x49x32xf32>
    %70 = vector.shape_cast %69 : vector<1x1x49x32xf32> to vector<49x32xf32>
    %71 = vector.shape_cast %68 : vector<49x32xf32> to vector<1x1x49x32xf32>
    tpu.vector_store %arg3[%c1_70, %c2_71, %c0_72, %c0_73], %71 {strides = array<i32>} : memref<2x3x49x32xf32, #tpu.memory_space<vmem>>, vector<1x1x49x32xf32>,
    return
  }
}

</mosaic_0001>

<llo_original>
// kernel: encoder_cnn_forward.1
$region0: #{encoder_cnn_forward.1}
  #allocation0 [shape = 'u32[]', space=smem, size = 0x4, offset = 0x4, fixed_abs, tag = 'smem constant byte address 0x4 - core index']
  #allocation1 [shape = 'u32[72,128]{1,0:T(1,128)}', space=vmem, size = 0x9000, scoped, tag = 'internal scratch']
  %s0 = inlined_call_operand.vmem [shape: bf16[2,3,49,16], index: 0, kind: input, shape index: {}]
  %s1 = inlined_call_operand.vmem [shape: bf16[3,16,32], index: 1, kind: input, shape index: {}]
  %s2 = inlined_call_operand.vmem [shape: f32[3,1,32], index: 2, kind: input, shape index: {}]
  %s3 = inlined_call_operand.vmem [shape: f32[2,3,49,32], index: 3, kind: output, shape index: {}]
  %s4 = sld [smem:[#allocation0]]
  $region22: #{encoder_cnn_forward.1} parent=0
    _
  %s6 = ssub.s32 1, %s4
  %s7 = scalar_select 0, %s6, %s4
  // Predicated region
  $region2: #{encoder_cnn_forward.1} parent=0 // pred_check
    _
  $region3: #{encoder_cnn_forward.1} parent=0 // pred_check_branch
    %9 = sbr.rel (0) target = $region5
  $region4: #{encoder_cnn_forward.1} parent=0 // pred_region
    _
  $region5: #{encoder_cnn_forward.1} parent=0 // pred_fallthru
    _
  // Predicated region
  $region6: #{encoder_cnn_forward.1} parent=0 // pred_check
    _
  $region7: #{encoder_cnn_forward.1} parent=0 // pred_check_branch
    %11 = sbr.rel (0) target = $region9
  $region8: #{encoder_cnn_forward.1} parent=0 // pred_region
    _
  $region9: #{encoder_cnn_forward.1} parent=0 // pred_fallthru
    _
  // Predicated region
  $region10: #{encoder_cnn_forward.1} parent=0 // pred_check
    _
  $region11: #{encoder_cnn_forward.1} parent=0 // pred_check_branch
    %13 = sbr.rel (0) target = $region13
  $region12: #{encoder_cnn_forward.1} parent=0 // pred_region
    _
  $region13: #{encoder_cnn_forward.1} parent=0 // pred_fallthru
    _
  %v15 = vld [vmem:[%s1] sm:$0xf]
  %v16 = vld [vmem:[%s1 + $0x4] sm:$0xf]
  %v17 = vld [vmem:[%s2] sm:$0x1]
  %v18 = vld [vmem:[%s0] sm:$0xf]
  %v19 = vld [vmem:[%s0 + $0x4] sm:$0xf]
  %v20 = vld [vmem:[%s0 + $0x8] sm:$0xf]
  %v21 = vld [vmem:[%s0 + $0xc] sm:$0xf]
  %v22 = vld [vmem:[%s0 + $0x10] sm:$0xf]
  %v23 = vld [vmem:[%s0 + $0x14] sm:$0xf]
  %v24 = vld [vmem:[%s0 + $0x18] sm:$0x1]
  %v26 = vperm.slane %v17, 0
  %v35 = vunpack.c.l.b16 %v18
  %v36 = vunpack.c.l.b16 %v19
  %v37 = vunpack.c.l.b16 %v20
  %v38 = vunpack.c.l.b16 %v21
  %v39 = vunpack.c.l.b16 %v22
  %v40 = vunpack.c.l.b16 %v23
  %v41 = vunpack.c.l.b16 %v24
  %v42 = vpack.c.b16 %v36, %v35
  %v43 = vpack.c.b16 %v38, %v37
  %v44 = vpack.c.b16 %v40, %v39
  %v45 = vpack.c.b16 %v41, %v41
  %v48 = vunpack.c.l.b16 %v15
  %v49 = vunpack.c.l.b16 %v16
  %v50 = vpack.c.b16 %v49, %v48
  %vm52 = vcmask 130048
  %v54 = vsel %vm52, %v42, 0
  %v57 = vsel %vm52, %v43, 0
  %v60 = vsel %vm52, %v44, 0
  %v63 = vsel %vm52, %v45, 0
  %65 = vmatpush.bf16.msra.mxu0 0
  %66 = vmatpush.bf16.msra.mxu0 0
  %67 = vmatpush.bf16.msra.mxu0 0
  %68 = vmatpush.bf16.msra.mxu0 0
  %69 = vmatpush.bf16.msra.mxu0 0
  %70 = vmatpush.bf16.msra.mxu0 0
  %71 = vmatpush.bf16.msra.mxu0 0
  %72 = vmatpush.bf16.msra.mxu0 %v50
  %73 = vmatmul.bf16.gmra.mxu0 %v54
  %v74 = vpop.f32.mrf.mxu0
  %v75 = vadd.f32 %v26, %v74
  %v76 = vpop.f32.mrf.mxu0
  %v77 = vadd.f32 %v26, %v76
  %78 = vmatmul.bf16.gmra.mxu0 %v57
  %v79 = vpop.f32.mrf.mxu0
  %v80 = vadd.f32 %v26, %v79
  %v81 = vpop.f32.mrf.mxu0
  %v82 = vadd.f32 %v26, %v81
  %83 = vmatmul.bf16.gmra.mxu0 %v60
  %v84 = vpop.f32.mrf.mxu0
  %v85 = vadd.f32 %v26, %v84
  %v86 = vpop.f32.mrf.mxu0
  %v87 = vadd.f32 %v26, %v86
  %88 = vmatmul.bf16.gmra.mxu0 %v63
  %v89 = vpop.f32.mrf.mxu0
  %v90 = vadd.f32 %v26, %v89
  %v91 = vpop.f32.mrf.mxu0
  %92 = vdwg.mxu0
  %v93 = vmax.f32 %v75, 0.0
  %v94 = vmax.f32 %v77, 0.0
  %v95 = vmax.f32 %v80, 0.0
  %v96 = vmax.f32 %v82, 0.0
  %v97 = vmax.f32 %v85, 0.0
  %v98 = vmax.f32 %v87, 0.0
  %v99 = vmax.f32 %v90, 0.0
  %vm100 = vcmask 261120
  %101 = vst.msk [vmem:[%s3] sm:$0xff] %vm100, %v93
  %102 = vst.msk [vmem:[%s3 + $0x8] sm:$0xff] %vm100, %v94
  %103 = vst.msk [vmem:[%s3 + $0x10] sm:$0xff] %vm100, %v95
  %104 = vst.msk [vmem:[%s3 + $0x18] sm:$0xff] %vm100, %v96
  %105 = vst.msk [vmem:[%s3 + $0x20] sm:$0xff] %vm100, %v97
  %106 = vst.msk [vmem:[%s3 + $0x28] sm:$0xff] %vm100, %v98
  %vm107 = vcmask 253952
  %108 = vst.msk [vmem:[%s3 + $0x30] sm:$0x1] %vm107, %v99
  %s109 = scalar_lea.vmem %s0, 84
  %v110 = vld [vmem:[%s109] sm:$0xf]
  %v111 = vld [vmem:[%s109 + $0x4] sm:$0xf]
  %v112 = vld [vmem:[%s109 + $0x8] sm:$0xf]
  %v113 = vld [vmem:[%s109 + $0xc] sm:$0xf]
  %v114 = vld [vmem:[%s109 + $0x10] sm:$0xf]
  %v115 = vld [vmem:[%s109 + $0x14] sm:$0xf]
  %v116 = vld [vmem:[%s109 + $0x18] sm:$0x1]
  %v124 = vunpack.c.l.b16 %v110
  %v125 = vunpack.c.l.b16 %v111
  %v126 = vunpack.c.l.b16 %v112
  %v127 = vunpack.c.l.b16 %v113
  %v128 = vunpack.c.l.b16 %v114
  %v129 = vunpack.c.l.b16 %v115
  %v130 = vunpack.c.l.b16 %v116
  %v131 = vpack.c.b16 %v125, %v124
  %v132 = vpack.c.b16 %v127, %v126
  %v133 = vpack.c.b16 %v129, %v128
  %v134 = vpack.c.b16 %v130, %v130
  %v136 = vsel %vm52, %v131, 0
  %v139 = vsel %vm52, %v132, 0
  %v142 = vsel %vm52, %v133, 0
  %v145 = vsel %vm52, %v134, 0
  %147 = vmatpush.bf16.msra.mxu0 0
  %148 = vmatpush.bf16.msra.mxu0 0
  %149 = vmatpush.bf16.msra.mxu0 0
  %150 = vmatpush.bf16.msra.mxu0 0
  %151 = vmatpush.bf16.msra.mxu0 0
  %152 = vmatpush.bf16.msra.mxu0 0
  %153 = vmatpush.bf16.msra.mxu0 0
  %154 = vmatpush.bf16.msra.mxu0 %v50
  %155 = vmatmul.bf16.gmra.mxu0 %v136
  %v156 = vpop.f32.mrf.mxu0
  %v157 = vadd.f32 %v26, %v156
  %v158 = vpop.f32.mrf.mxu0
  %v159 = vadd.f32 %v26, %v158
  %160 = vmatmul.bf16.gmra.mxu0 %v139
  %v161 = vpop.f32.mrf.mxu0
  %v162 = vadd.f32 %v26, %v161
  %v163 = vpop.f32.mrf.mxu0
  %v164 = vadd.f32 %v26, %v163
  %165 = vmatmul.bf16.gmra.mxu0 %v142
  %v166 = vpop.f32.mrf.mxu0
  %v167 = vadd.f32 %v26, %v166
  %v168 = vpop.f32.mrf.mxu0
  %v169 = vadd.f32 %v26, %v168
  %170 = vmatmul.bf16.gmra.mxu0 %v145
  %v171 = vpop.f32.mrf.mxu0
  %v172 = vadd.f32 %v26, %v171
  %v173 = vpop.f32.mrf.mxu0
  %174 = vdwg.mxu0
  %v175 = vmax.f32 %v157, 0.0
  %v176 = vmax.f32 %v159, 0.0
  %v177 = vmax.f32 %v162, 0.0
  %v178 = vmax.f32 %v164, 0.0
  %v179 = vmax.f32 %v167, 0.0
  %v180 = vmax.f32 %v169, 0.0
  %v181 = vmax.f32 %v172, 0.0
  %s182 = scalar_lea.vmem %s3, 168
  %183 = vst.msk [vmem:[%s182] sm:$0xff] %vm100, %v175
  %184 = vst.msk [vmem:[%s182 + $0x8] sm:$0xff] %vm100, %v176
  %185 = vst.msk [vmem:[%s182 + $0x10] sm:$0xff] %vm100, %v177
  %186 = vst.msk [vmem:[%s182 + $0x18] sm:$0xff] %vm100, %v178
  %187 = vst.msk [vmem:[%s182 + $0x20] sm:$0xff] %vm100, %v179
  %188 = vst.msk [vmem:[%s182 + $0x28] sm:$0xff] %vm100, %v180
  %189 = vst.msk [vmem:[%s182 + $0x30] sm:$0x1] %vm107, %v181
  %s190 = scalar_lea.vmem %s1, 8
  %v191 = vld [vmem:[%s190] sm:$0xf]
  %v192 = vld [vmem:[%s190 + $0x4] sm:$0xf]
  %s193 = scalar_lea.vmem %s2, 1
  %v194 = vld [vmem:[%s193] sm:$0x1]
  %s195 = scalar_lea.vmem %s0, 28
  %v196 = vld [vmem:[%s195] sm:$0xf]
  %v197 = vld [vmem:[%s195 + $0x4] sm:$0xf]
  %v198 = vld [vmem:[%s195 + $0x8] sm:$0xf]
  %v199 = vld [vmem:[%s195 + $0xc] sm:$0xf]
  %v200 = vld [vmem:[%s195 + $0x10] sm:$0xf]
  %v201 = vld [vmem:[%s195 + $0x14] sm:$0xf]
  %v202 = vld [vmem:[%s195 + $0x18] sm:$0x1]
  %v204 = vperm.slane %v194, 0
  %v213 = vunpack.c.l.b16 %v196
  %v214 = vunpack.c.l.b16 %v197
  %v215 = vunpack.c.l.b16 %v198
  %v216 = vunpack.c.l.b16 %v199
  %v217 = vunpack.c.l.b16 %v200
  %v218 = vunpack.c.l.b16 %v201
  %v219 = vunpack.c.l.b16 %v202
  %v220 = vpack.c.b16 %v214, %v213
  %v221 = vpack.c.b16 %v216, %v215
  %v222 = vpack.c.b16 %v218, %v217
  %v223 = vpack.c.b16 %v219, %v219
  %v226 = vunpack.c.l.b16 %v191
  %v227 = vunpack.c.l.b16 %v192
  %v228 = vpack.c.b16 %v227, %v226
  %v231 = vsel %vm52, %v220, 0
  %v234 = vsel %vm52, %v221, 0
  %v237 = vsel %vm52, %v222, 0
  %v240 = vsel %vm52, %v223, 0
  %242 = vmatpush.bf16.msra.mxu0 0
  %243 = vmatpush.bf16.msra.mxu0 0
  %244 = vmatpush.bf16.msra.mxu0 0
  %245 = vmatpush.bf16.msra.mxu0 0
  %246 = vmatpush.bf16.msra.mxu0 0
  %247 = vmatpush.bf16.msra.mxu0 0
  %248 = vmatpush.bf16.msra.mxu0 0
  %249 = vmatpush.bf16.msra.mxu0 %v228
  %250 = vmatmul.bf16.gmra.mxu0 %v231
  %v251 = vpop.f32.mrf.mxu0
  %v252 = vadd.f32 %v204, %v251
  %v253 = vpop.f32.mrf.mxu0
  %v254 = vadd.f32 %v204, %v253
  %255 = vmatmul.bf16.gmra.mxu0 %v234
  %v256 = vpop.f32.mrf.mxu0
  %v257 = vadd.f32 %v204, %v256
  %v258 = vpop.f32.mrf.mxu0
  %v259 = vadd.f32 %v204, %v258
  %260 = vmatmul.bf16.gmra.mxu0 %v237
  %v261 = vpop.f32.mrf.mxu0
  %v262 = vadd.f32 %v204, %v261
  %v263 = vpop.f32.mrf.mxu0
  %v264 = vadd.f32 %v204, %v263
  %265 = vmatmul.bf16.gmra.mxu0 %v240
  %v266 = vpop.f32.mrf.mxu0
  %v267 = vadd.f32 %v204, %v266
  %v268 = vpop.f32.mrf.mxu0
  %269 = vdwg.mxu0
  %v270 = vmax.f32 %v252, 0.0
  %v271 = vmax.f32 %v254, 0.0
  %v272 = vmax.f32 %v257, 0.0
  %v273 = vmax.f32 %v259, 0.0
  %v274 = vmax.f32 %v262, 0.0
  %v275 = vmax.f32 %v264, 0.0
  %v276 = vmax.f32 %v267, 0.0
  %s277 = scalar_lea.vmem %s3, 56
  %278 = vst.msk [vmem:[%s277] sm:$0xff] %vm100, %v270
  %279 = vst.msk [vmem:[%s277 + $0x8] sm:$0xff] %vm100, %v271
  %280 = vst.msk [vmem:[%s277 + $0x10] sm:$0xff] %vm100, %v272
  %281 = vst.msk [vmem:[%s277 + $0x18] sm:$0xff] %vm100, %v273
  %282 = vst.msk [vmem:[%s277 + $0x20] sm:$0xff] %vm100, %v274
  %283 = vst.msk [vmem:[%s277 + $0x28] sm:$0xff] %vm100, %v275
  %284 = vst.msk [vmem:[%s277 + $0x30] sm:$0x1] %vm107, %v276
  %s285 = scalar_lea.vmem %s0, 112
  %v286 = vld [vmem:[%s285] sm:$0xf]
  %v287 = vld [vmem:[%s285 + $0x4] sm:$0xf]
  %v288 = vld [vmem:[%s285 + $0x8] sm:$0xf]
  %v289 = vld [vmem:[%s285 + $0xc] sm:$0xf]
  %v290 = vld [vmem:[%s285 + $0x10] sm:$0xf]
  %v291 = vld [vmem:[%s285 + $0x14] sm:$0xf]
  %v292 = vld [vmem:[%s285 + $0x18] sm:$0x1]
  %v300 = vunpack.c.l.b16 %v286
  %v301 = vunpack.c.l.b16 %v287
  %v302 = vunpack.c.l.b16 %v288
  %v303 = vunpack.c.l.b16 %v289
  %v304 = vunpack.c.l.b16 %v290
  %v305 = vunpack.c.l.b16 %v291
  %v306 = vunpack.c.l.b16 %v292
  %v307 = vpack.c.b16 %v301, %v300
  %v308 = vpack.c.b16 %v303, %v302
  %v309 = vpack.c.b16 %v305, %v304
  %v310 = vpack.c.b16 %v306, %v306
  %v312 = vsel %vm52, %v307, 0
  %v315 = vsel %vm52, %v308, 0
  %v318 = vsel %vm52, %v309, 0
  %v321 = vsel %vm52, %v310, 0
  %323 = vmatpush.bf16.msra.mxu0 0
  %324 = vmatpush.bf16.msra.mxu0 0
  %325 = vmatpush.bf16.msra.mxu0 0
  %326 = vmatpush.bf16.msra.mxu0 0
  %327 = vmatpush.bf16.msra.mxu0 0
  %328 = vmatpush.bf16.msra.mxu0 0
  %329 = vmatpush.bf16.msra.mxu0 0
  %330 = vmatpush.bf16.msra.mxu0 %v228
  %331 = vmatmul.bf16.gmra.mxu0 %v312
  %v332 = vpop.f32.mrf.mxu0
  %v333 = vadd.f32 %v204, %v332
  %v334 = vpop.f32.mrf.mxu0
  %v335 = vadd.f32 %v204, %v334
  %336 = vmatmul.bf16.gmra.mxu0 %v315
  %v337 = vpop.f32.mrf.mxu0
  %v338 = vadd.f32 %v204, %v337
  %v339 = vpop.f32.mrf.mxu0
  %v340 = vadd.f32 %v204, %v339
  %341 = vmatmul.bf16.gmra.mxu0 %v318
  %v342 = vpop.f32.mrf.mxu0
  %v343 = vadd.f32 %v204, %v342
  %v344 = vpop.f32.mrf.mxu0
  %v345 = vadd.f32 %v204, %v344
  %346 = vmatmul.bf16.gmra.mxu0 %v321
  %v347 = vpop.f32.mrf.mxu0
  %v348 = vadd.f32 %v204, %v347
  %v349 = vpop.f32.mrf.mxu0
  %350 = vdwg.mxu0
  %v351 = vmax.f32 %v333, 0.0
  %v352 = vmax.f32 %v335, 0.0
  %v353 = vmax.f32 %v338, 0.0
  %v354 = vmax.f32 %v340, 0.0
  %v355 = vmax.f32 %v343, 0.0
  %v356 = vmax.f32 %v345, 0.0
  %v357 = vmax.f32 %v348, 0.0
  %s358 = scalar_lea.vmem %s3, 224
  %359 = vst.msk [vmem:[%s358] sm:$0xff] %vm100, %v351
  %360 = vst.msk [vmem:[%s358 + $0x8] sm:$0xff] %vm100, %v352
  %361 = vst.msk [vmem:[%s358 + $0x10] sm:$0xff] %vm100, %v353
  %362 = vst.msk [vmem:[%s358 + $0x18] sm:$0xff] %vm100, %v354
  %363 = vst.msk [vmem:[%s358 + $0x20] sm:$0xff] %vm100, %v355
  %364 = vst.msk [vmem:[%s358 + $0x28] sm:$0xff] %vm100, %v356
  %365 = vst.msk [vmem:[%s358 + $0x30] sm:$0x1] %vm107, %v357
  %s366 = scalar_lea.vmem %s1, 16
  %v367 = vld [vmem:[%s366] sm:$0xf]
  %v368 = vld [vmem:[%s366 + $0x4] sm:$0xf]
  %s369 = scalar_lea.vmem %s2, 2
  %v370 = vld [vmem:[%s369] sm:$0x1]
  %s371 = scalar_lea.vmem %s0, 56
  %v372 = vld [vmem:[%s371] sm:$0xf]
  %v373 = vld [vmem:[%s371 + $0x4] sm:$0xf]
  %v374 = vld [vmem:[%s371 + $0x8] sm:$0xf]
  %v375 = vld [vmem:[%s371 + $0xc] sm:$0xf]
  %v376 = vld [vmem:[%s371 + $0x10] sm:$0xf]
  %v377 = vld [vmem:[%s371 + $0x14] sm:$0xf]
  %v378 = vld [vmem:[%s371 + $0x18] sm:$0x1]
  %v380 = vperm.slane %v370, 0
  %v389 = vunpack.c.l.b16 %v372
  %v390 = vunpack.c.l.b16 %v373
  %v391 = vunpack.c.l.b16 %v374
  %v392 = vunpack.c.l.b16 %v375
  %v393 = vunpack.c.l.b16 %v376
  %v394 = vunpack.c.l.b16 %v377
  %v395 = vunpack.c.l.b16 %v378
  %v396 = vpack.c.b16 %v390, %v389
  %v397 = vpack.c.b16 %v392, %v391
  %v398 = vpack.c.b16 %v394, %v393
  %v399 = vpack.c.b16 %v395, %v395
  %v402 = vunpack.c.l.b16 %v367
  %v403 = vunpack.c.l.b16 %v368
  %v404 = vpack.c.b16 %v403, %v402
  %v407 = vsel %vm52, %v396, 0
  %v410 = vsel %vm52, %v397, 0
  %v413 = vsel %vm52, %v398, 0
  %v416 = vsel %vm52, %v399, 0
  %418 = vmatpush.bf16.msra.mxu0 0
  %419 = vmatpush.bf16.msra.mxu0 0
  %420 = vmatpush.bf16.msra.mxu0 0
  %421 = vmatpush.bf16.msra.mxu0 0
  %422 = vmatpush.bf16.msra.mxu0 0
  %423 = vmatpush.bf16.msra.mxu0 0
  %424 = vmatpush.bf16.msra.mxu0 0
  %425 = vmatpush.bf16.msra.mxu0 %v404
  %426 = vmatmul.bf16.gmra.mxu0 %v407
  %v427 = vpop.f32.mrf.mxu0
  %v428 = vadd.f32 %v380, %v427
  %v429 = vpop.f32.mrf.mxu0
  %v430 = vadd.f32 %v380, %v429
  %431 = vmatmul.bf16.gmra.mxu0 %v410
  %v432 = vpop.f32.mrf.mxu0
  %v433 = vadd.f32 %v380, %v432
  %v434 = vpop.f32.mrf.mxu0
  %v435 = vadd.f32 %v380, %v434
  %436 = vmatmul.bf16.gmra.mxu0 %v413
  %v437 = vpop.f32.mrf.mxu0
  %v438 = vadd.f32 %v380, %v437
  %v439 = vpop.f32.mrf.mxu0
  %v440 = vadd.f32 %v380, %v439
  %441 = vmatmul.bf16.gmra.mxu0 %v416
  %v442 = vpop.f32.mrf.mxu0
  %v443 = vadd.f32 %v380, %v442
  %v444 = vpop.f32.mrf.mxu0
  %445 = vdwg.mxu0
  %v446 = vmax.f32 %v428, 0.0
  %v447 = vmax.f32 %v430, 0.0
  %v448 = vmax.f32 %v433, 0.0
  %v449 = vmax.f32 %v435, 0.0
  %v450 = vmax.f32 %v438, 0.0
  %v451 = vmax.f32 %v440, 0.0
  %v452 = vmax.f32 %v443, 0.0
  %s453 = scalar_lea.vmem %s3, 112
  %454 = vst.msk [vmem:[%s453] sm:$0xff] %vm100, %v446
  %455 = vst.msk [vmem:[%s453 + $0x8] sm:$0xff] %vm100, %v447
  %456 = vst.msk [vmem:[%s453 + $0x10] sm:$0xff] %vm100, %v448
  %457 = vst.msk [vmem:[%s453 + $0x18] sm:$0xff] %vm100, %v449
  %458 = vst.msk [vmem:[%s453 + $0x20] sm:$0xff] %vm100, %v450
  %459 = vst.msk [vmem:[%s453 + $0x28] sm:$0xff] %vm100, %v451
  %460 = vst.msk [vmem:[%s453 + $0x30] sm:$0x1] %vm107, %v452
  %s461 = scalar_lea.vmem %s0, 140
  %v462 = vld [vmem:[%s461] sm:$0xf]
  %v463 = vld [vmem:[%s461 + $0x4] sm:$0xf]
  %v464 = vld [vmem:[%s461 + $0x8] sm:$0xf]
  %v465 = vld [vmem:[%s461 + $0xc] sm:$0xf]
  %v466 = vld [vmem:[%s461 + $0x10] sm:$0xf]
  %v467 = vld [vmem:[%s461 + $0x14] sm:$0xf]
  %v468 = vld [vmem:[%s461 + $0x18] sm:$0x1]
  %v476 = vunpack.c.l.b16 %v462
  %v477 = vunpack.c.l.b16 %v463
  %v478 = vunpack.c.l.b16 %v464
  %v479 = vunpack.c.l.b16 %v465
  %v480 = vunpack.c.l.b16 %v466
  %v481 = vunpack.c.l.b16 %v467
  %v482 = vunpack.c.l.b16 %v468
  %v483 = vpack.c.b16 %v477, %v476
  %v484 = vpack.c.b16 %v479, %v478
  %v485 = vpack.c.b16 %v481, %v480
  %v486 = vpack.c.b16 %v482, %v482
  %v488 = vsel %vm52, %v483, 0
  %v491 = vsel %vm52, %v484, 0
  %v494 = vsel %vm52, %v485, 0
  %v497 = vsel %vm52, %v486, 0
  %499 = vmatpush.bf16.msra.mxu0 0
  %500 = vmatpush.bf16.msra.mxu0 0
  %501 = vmatpush.bf16.msra.mxu0 0
  %502 = vmatpush.bf16.msra.mxu0 0
  %503 = vmatpush.bf16.msra.mxu0 0
  %504 = vmatpush.bf16.msra.mxu0 0
  %505 = vmatpush.bf16.msra.mxu0 0
  %506 = vmatpush.bf16.msra.mxu0 %v404
  %507 = vmatmul.bf16.gmra.mxu0 %v488
  %v508 = vpop.f32.mrf.mxu0
  %v509 = vadd.f32 %v380, %v508
  %v510 = vpop.f32.mrf.mxu0
  %v511 = vadd.f32 %v380, %v510
  %512 = vmatmul.bf16.gmra.mxu0 %v491
  %v513 = vpop.f32.mrf.mxu0
  %v514 = vadd.f32 %v380, %v513
  %v515 = vpop.f32.mrf.mxu0
  %v516 = vadd.f32 %v380, %v515
  %517 = vmatmul.bf16.gmra.mxu0 %v494
  %v518 = vpop.f32.mrf.mxu0
  %v519 = vadd.f32 %v380, %v518
  %v520 = vpop.f32.mrf.mxu0
  %v521 = vadd.f32 %v380, %v520
  %522 = vmatmul.bf16.gmra.mxu0 %v497
  %v523 = vpop.f32.mrf.mxu0
  %v524 = vadd.f32 %v380, %v523
  %v525 = vpop.f32.mrf.mxu0
  %526 = vdwg.mxu0
  %v527 = vmax.f32 %v509, 0.0
  %v528 = vmax.f32 %v511, 0.0
  %v529 = vmax.f32 %v514, 0.0
  %v530 = vmax.f32 %v516, 0.0
  %v531 = vmax.f32 %v519, 0.0
  %v532 = vmax.f32 %v521, 0.0
  %v533 = vmax.f32 %v524, 0.0
  %s534 = scalar_lea.vmem %s3, 280
  %535 = vst.msk [vmem:[%s534] sm:$0xff] %vm100, %v527
  %536 = vst.msk [vmem:[%s534 + $0x8] sm:$0xff] %vm100, %v528
  %537 = vst.msk [vmem:[%s534 + $0x10] sm:$0xff] %vm100, %v529
  %538 = vst.msk [vmem:[%s534 + $0x18] sm:$0xff] %vm100, %v530
  %539 = vst.msk [vmem:[%s534 + $0x20] sm:$0xff] %vm100, %v531
  %540 = vst.msk [vmem:[%s534 + $0x28] sm:$0xff] %vm100, %v532
  %541 = vst.msk [vmem:[%s534 + $0x30] sm:$0x1] %vm107, %v533
  // Predicated region
  $region14: #{encoder_cnn_forward.1} parent=0 // pred_check
    _
  $region15: #{encoder_cnn_forward.1} parent=0 // pred_check_branch
    %543 = sbr.rel (0) target = $region17
  $region16: #{encoder_cnn_forward.1} parent=0 // pred_region
    _
  $region17: #{encoder_cnn_forward.1} parent=0 // pred_fallthru
    _
  // Predicated region
  $region18: #{encoder_cnn_forward.1} parent=0 // pred_check
    _
  $region19: #{encoder_cnn_forward.1} parent=0 // pred_check_branch
    %545 = sbr.rel (0) target = $region21
  $region20: #{encoder_cnn_forward.1} parent=0 // pred_region
    _
  $region21: #{encoder_cnn_forward.1} parent=0 // pred_fallthru
    _

</llo_original>
